<compile_context>
chip_gen: v5e
topology: v5e:2x2
jax: 0.10.0
libtpu: 0.0.40
codegen_flags: <defaults>
</compile_context>

<pallas_src>
import jax
import jax.numpy as jnp
from jax.experimental import pallas as pl
from jax.experimental.pallas import tpu as pltpu


def _round_up(a, b):
    return ((a + b - 1) // b) * b


def rope_kernel(x_ref, t_ref, inv_freq_ref, stats_ref, o_ref):
    # stats_ref is SMEM f32[2] = [t_min, scale]; min/max are global, computed in XLA.
    t_min = stats_ref[0]
    scale = stats_ref[1]

    t = jnp.maximum(t_ref[...] - t_min, 1e-8) * scale      # [TN, 1] f32
    inv_freq = inv_freq_ref[...]                            # [1, D//2] f32
    freqs = t * inv_freq                                    # [TN, D//2]
    cos = jnp.cos(freqs)                                    # half-width trig only
    sin = jnp.sin(freqs)

    x = x_ref[...].astype(jnp.float32)                      # [TN, D]
    d_half = x.shape[-1] // 2
    x1 = x[:, :d_half]
    x2 = x[:, d_half:]

    # out[:, :D/2] = x1*cos - x2*sin ; out[:, D/2:] = x2*cos + x1*sin
    # (lane-aligned, unmasked stores when D/2 % 128 == 0, e.g. production D=768)
    o_ref[:, :d_half] = (x1 * cos - x2 * sin).astype(o_ref.dtype)
    o_ref[:, d_half:] = (x2 * cos + x1 * sin).astype(o_ref.dtype)


def rope_pallas(x, timestamps, *, base=1000, time_scale=1.0, time_norm=True,
                block_n=1024, out_dtype=None):
    """x: [N, D] float, timestamps: [N, 1] (or [N]) float -> [N, D]."""
    n, d = x.shape
    assert d % 2 == 0
    out_dtype = x.dtype if out_dtype is None else out_dtype

    inv_freq = 1.0 / (base ** (jnp.arange(0, d, 2, dtype=jnp.float32) / d))  # [D//2]
    inv_freq = inv_freq.reshape(1, d // 2)

    # Global min/max stays in XLA (must be global, not per-tile); the affine is folded
    # into the kernel via SMEM scalars.
    t_raw = timestamps.astype(jnp.float32).reshape(n, 1)
    t_min = jnp.min(t_raw)
    t_max = jnp.max(t_raw)
    if time_norm:
        scale = jnp.float32(time_scale) / (t_max - t_min + 1e-8)
    else:
        scale = jnp.float32(1.0)
    stats = jnp.stack([t_min, scale]).astype(jnp.float32)   # SMEM f32[2]

    # --- Row-tile selection -------------------------------------------------------
    # Keep the tile large (amortize ~0.35us/step pipeline overhead) but guarantee at
    # least ~4 grid steps (>= 2 per TensorCore on v7x) so both TCs pipeline.
    MIN_GRID_STEPS = 4
    if n <= 8:
        tn = n                                   # full-extent block, no (8,128) pad issue
    else:
        tn = min(block_n, max(8, _round_up(pl.cdiv(n, MIN_GRID_STEPS), 8)))
        tn = min(tn, _round_up(n, 8))
    grid = (pl.cdiv(n, tn),)

    x_isz = jnp.dtype(x.dtype).itemsize
    o_isz = jnp.dtype(out_dtype).itemsize

    # --- VMEM budget (double-buffered I/O + lane-padded t + f32 temporaries) -------
    vmem_bytes = (2 * tn * d * x_isz            # x tiles (double-buffered)
                  + 2 * tn * d * o_isz          # out tiles (double-buffered)
                  + 2 * tn * 128 * 4            # [TN,1] t tiles, lane-padded to 128
                  + 4 * tn * d * 4              # cos/sin/x1/x2 f32 temporaries headroom
                  + (1 << 20))
    vmem_limit = int(min(max(vmem_bytes, 32 << 20), 48 << 20))

    cost = pl.CostEstimate(
        flops=4 * n * d,                        # muls/adds for freqs + the two half-writes
        transcendentals=n * d,                  # cos + sin over D/2 each
        bytes_accessed=n * d * (x_isz + o_isz) + n * 4 + (d // 2) * 4,
    )

    return pl.pallas_call(
        rope_kernel,
        out_shape=jax.ShapeDtypeStruct((n, d), out_dtype),
        grid=grid,
        in_specs=[
            pl.BlockSpec((tn, d), lambda i: (i, 0)),            # x row tile
            pl.BlockSpec((tn, 1), lambda i: (i, 0)),            # raw timestamps tile
            pl.BlockSpec((1, d // 2), lambda i: (0, 0)),        # inv_freq, replicated
            pl.BlockSpec(memory_space=pltpu.MemorySpace.SMEM),  # [t_min, scale] scalars
        ],
        out_specs=pl.BlockSpec((tn, d), lambda i: (i, 0)),
        compiler_params=pltpu.CompilerParams(
            dimension_semantics=("parallel",),  # row tiles independent (v7x 2-TC sharding)
            vmem_limit_bytes=vmem_limit,
        ),
        cost_estimate=cost,
    )(x, t_raw, inv_freq, stats)


def rope_reference(x, timestamps, *, base=1000, time_scale=1.0, time_norm=True):
    """Pure-JAX reference mirroring the PyTorch forward (non-cached path)."""
    n, d = x.shape
    inv_freq = 1.0 / (base ** (jnp.arange(0, d, 2, dtype=jnp.float32) / d))
    t = timestamps.astype(jnp.float32).reshape(n, 1)
    if time_norm:
        t = jnp.maximum(t - t.min(), 1e-8) / (t.max() - t.min() + 1e-8) * time_scale
    else:
        t = jnp.maximum(t - t.min(), 1e-8)
    freqs = t * inv_freq[None, :]                  # [N, D//2]
    emb = jnp.concatenate([freqs, freqs], axis=-1)
    cos, sin = jnp.cos(emb), jnp.sin(emb)
    x1, x2 = x[:, : d // 2], x[:, d // 2:]
    x_rot = jnp.concatenate([-x2, x1], axis=-1)
    return x * cos + x_rot * sin


if __name__ == "__main__":
    key = jax.random.PRNGKey(0)
    kx, kt, kx2, kt2 = jax.random.split(key, 4)

    # Case 1: lane-aligned halves (D/2 % 128 == 0, like production D=768), multiple row
    # tiles plus a partial final tile (N=50 -> tn=16 -> grid=(4,), last tile 2 rows).
    N, D = 50, 256
    x = jax.random.normal(kx, (N, D), dtype=jnp.float32)
    timestamps = jax.random.uniform(kt, (N, 1), jnp.float32, 0.0, 100.0)
    out = jax.block_until_ready(rope_pallas(x, timestamps))
    ref = rope_reference(x, timestamps)
    assert out.shape == (N, D)
    assert jnp.allclose(out, ref, atol=1e-5, rtol=1e-5), "mismatch vs reference (aligned)"

    # Case 2: tiny unaligned shape (D=32, N=7): single full-extent tile, masked-store path.
    N2, D2 = 7, 32
    x2 = jax.random.normal(kx2, (N2, D2), dtype=jnp.float32)
    ts2 = jax.random.uniform(kt2, (N2, 1), jnp.float32, 0.0, 10.0)
    out2 = jax.block_until_ready(rope_pallas(x2, ts2))
    ref2 = rope_reference(x2, ts2)
    assert jnp.allclose(out2, ref2, atol=1e-5, rtol=1e-5), "mismatch vs reference (small)"

    # TODO(synk): dropout (p=0.0) and the integer-timestamp cos/sin cache branch are folded
    # into the direct-compute path (numerically identical); torch.cuda.empty_cache is a no-op.
    print("KERNEL_OK")
</pallas_src>

<mosaic_0001>
module attributes {stable_mosaic.version = 11 : i64} {
  func.func @rope_kernel(%arg0: i32, %arg1: memref<16x256xf32, #tpu.memory_space<vmem>>, %arg2: memref<16x1xf32, #tpu.memory_space<vmem>>, %arg3: memref<1x128xf32, #tpu.memory_space<vmem>>, %arg4: memref<2xf32, #tpu.memory_space<smem>>, %arg5: memref<16x256xf32, #tpu.memory_space<vmem>>) attributes {dimension_semantics = [#tpu.dimension_semantics<parallel>], iteration_bounds = array<i64: 4>, scalar_prefetch = 0 : i64, scratch_operands = 0 : i64, tpu.core_type = #tpu.core_type<tc>, window_params = [{transform_indices = @transform_0, window_bounds = array<i64: 16, 256>}, {transform_indices = @transform_1, window_bounds = array<i64: 16, 1>}, {pipeline_mode = #tpu.pipeline_mode<synchronous>, transform_indices = @transform_2, window_bounds = array<i64: 1, 128>}, {transform_indices = @transform_3, window_bounds = array<i64: 2>}, {transform_indices = @transform_4, window_bounds = array<i64: 16, 256>}]} {
    %c0 = arith.constant 0 : index
    %0 = memref.load %arg4[%c0] : memref<2xf32, #tpu.memory_space<smem>>
    %c1 = arith.constant 1 : index
    %1 = memref.load %arg4[%c1] : memref<2xf32, #tpu.memory_space<smem>>
    %c0_0 = arith.constant 0 : index
    %c0_1 = arith.constant 0 : index
    %2 = vector.load %arg2[%c0_0, %c0_1] : memref<16x1xf32, #tpu.memory_space<vmem>>, vector<16x1xf32>
    %3 = vector.broadcast %0 : f32 to vector<16x1xf32>
    %4 = arith.subf %2, %3 : vector<16x1xf32>
    %cst = arith.constant 9.99999993E-9 : f32
    %5 = vector.broadcast %cst : f32 to vector<16x1xf32>
    %6 = arith.maximumf %4, %5 : vector<16x1xf32>
    %7 = vector.broadcast %1 : f32 to vector<16x1xf32>
    %8 = arith.mulf %6, %7 : vector<16x1xf32>
    %c0_2 = arith.constant 0 : index
    %c0_3 = arith.constant 0 : index
    %9 = vector.load %arg3[%c0_2, %c0_3] : memref<1x128xf32, #tpu.memory_space<vmem>>, vector<1x128xf32>
    %10 = vector.broadcast %8 : vector<16x1xf32> to vector<16x128xf32>
    %11 = vector.broadcast %9 : vector<1x128xf32> to vector<16x128xf32>
    %12 = arith.mulf %10, %11 : vector<16x128xf32>
    %13 = math.cos %12 : vector<16x128xf32>
    %14 = math.sin %12 : vector<16x128xf32>
    %c0_4 = arith.constant 0 : index
    %c0_5 = arith.constant 0 : index
    %15 = vector.load %arg1[%c0_4, %c0_5] : memref<16x256xf32, #tpu.memory_space<vmem>>, vector<16x256xf32>
    %16 = vector.extract_strided_slice %15 {offsets = [0, 0], sizes = [16, 128], strides = [1, 1]} : vector<16x256xf32> to vector<16x128xf32>
    %17 = vector.extract_strided_slice %15 {offsets = [0, 128], sizes = [16, 128], strides = [1, 1]} : vector<16x256xf32> to vector<16x128xf32>
    %18 = arith.mulf %16, %13 : vector<16x128xf32>
    %19 = arith.mulf %17, %14 : vector<16x128xf32>
    %20 = arith.subf %18, %19 : vector<16x128xf32>
    %c0_6 = arith.constant 0 : index
    %c0_7 = arith.constant 0 : index
    %21 = vector.load %arg5[%c0_6, %c0_7] : memref<16x256xf32, #tpu.memory_space<vmem>>, vector<16x128xf32>
    tpu.vector_store %arg5[%c0_6, %c0_7], %20 {strides = array<i32>} : memref<16x256xf32, #tpu.memory_space<vmem>>, vector<16x128xf32>,
    %22 = arith.mulf %17, %13 : vector<16x128xf32>
    %23 = arith.mulf %16, %14 : vector<16x128xf32>
    %24 = arith.addf %22, %23 : vector<16x128xf32>
    %c0_8 = arith.constant 0 : index
    %c128 = arith.constant 128 : index
    %25 = vector.load %arg5[%c0_8, %c128] : memref<16x256xf32, #tpu.memory_space<vmem>>, vector<16x128xf32>
    tpu.vector_store %arg5[%c0_8, %c128], %24 {strides = array<i32>} : memref<16x256xf32, #tpu.memory_space<vmem>>, vector<16x128xf32>,
    return
  }
  func.func @transform_0(%arg0: i32) -> (i32, i32) {
    %c0_i32 = arith.constant 0 : i32
    %c0_i32_0 = arith.constant 0 : i32
    return %arg0, %c0_i32 : i32, i32
  }
  func.func @transform_1(%arg0: i32) -> (i32, i32) {
    %c0_i32 = arith.constant 0 : i32
    %c0_i32_0 = arith.constant 0 : i32
    return %arg0, %c0_i32 : i32, i32
  }
  func.func @transform_2(%arg0: i32) -> (i32, i32) {
    %c0_i32 = arith.constant 0 : i32
    %c0_i32_0 = arith.constant 0 : i32
    %c0_i32_1 = arith.constant 0 : i32
    return %c0_i32, %c0_i32_0 : i32, i32
  }
  func.func @transform_3(%arg0: i32) -> i32 {
    %c0_i32 = arith.constant 0 : i32
    %c0_i32_0 = arith.constant 0 : i32
    return %c0_i32 : i32
  }
  func.func @transform_4(%arg0: i32) -> (i32, i32) {
    %c0_i32 = arith.constant 0 : i32
    %c0_i32_0 = arith.constant 0 : i32
    return %arg0, %c0_i32 : i32, i32
  }
}

</mosaic_0001>

<llo_original>
// kernel: tpu_custom_call.1
$region0: #{tpu_custom_call.1}
  #allocation0 [shape = 'u32[]', space=smem, size = 0x4, offset = 0x4, fixed_abs, tag = 'smem constant byte address 0x4 - core index']
  #allocation1 [shape = 'u32[72,128]{1,0:T(1,128)}', space=vmem, size = 0x9000, scoped, tag = 'internal scratch']
  %s0 = inlined_call_operand.hbm [shape: f32[50,256], index: 0, kind: input, shape index: {}]
  %s1 = inlined_call_operand.vmem [shape: f32[50,1], index: 1, kind: input, shape index: {}]
  %s2 = inlined_call_operand.vmem [shape: f32[1,128], index: 2, kind: input, shape index: {}]
  %s3 = inlined_call_operand.vmem [shape: f32[2], index: 3, kind: input, shape index: {}]
  %s4 = inlined_call_operand.hbm [shape: f32[50,256], index: 4, kind: output, shape index: {}]
  %s5 = sld [smem:[#allocation0]]
  $region57: #{tpu_custom_call.1} parent=0
    _
  %s7 = ssub.s32 1, %s5
  %s8 = scalar_select 0, %s7, %s5
  $region1: #{tpu_custom_call.1} parent=0
    #allocation2 [shape = 'u8[32768]{0}', space=vmem, size = 0x8000, scoped, tag = 'input window, operand 0']
    #allocation3 [shape = 's32[2]{0}', space=sflag, size = 0x8, scoped, tag = 'scoped memory for tpu_custom_call.1']
    #allocation4 [shape = 's32[2]{0}', space=sflag, size = 0x8, scoped, tag = 'scoped memory for tpu_custom_call.1']
    #allocation5 [shape = 's32[2]{0}', space=sflag, size = 0x8, scoped, tag = 'scoped memory for tpu_custom_call.1']
    #allocation6 [shape = 'u8[512]{0}', space=smem, size = 0x200, scoped, tag = 'input window, operand 3, single buffered']
    #allocation7 [shape = 'u8[32768]{0}', space=vmem, size = 0x8000, scoped, tag = 'output window, operand 0']
    %9 = vsyncpa [#allocation3], 0
    %s10 = scalar_lea.sflag [#allocation3], 1
    %11 = vsyncpa %s10, 0
    %12 = vsyncpa [#allocation5], 0
    %13 = vsyncpa [#allocation4], 0
    %s14 = scalar_lea.sflag [#allocation4], 1
    %15 = vsyncpa %s14, 0
    loop: start=0, step=1, limit=6
    $region2: #{tpu_custom_call.1} parent=1 // loop_pre_header
      _
    $region3: #{tpu_custom_call.1} parent=1 // loop_header
      %s17 = sphi 0, %s21
      %p18 = scmp.ge.s32.totalorder %s17, 6
      %s27 = sphi 0, %s29
      %s30 = sphi 0, %s27
      %s31 = sphi 0, %s30
      %s47 = sphi 0, %s31
      %s53 = sphi 0, %s55
      %s56 = sphi 0, %s53
      %s57 = sphi 0, %s56
      %s73 = sphi 0, %s57
      %s77 = sphi 0, %s77
      %s79 = sphi 0, %s77
      %s80 = sphi 0, %s79
      %s94 = sphi 0, %s80
      %s98 = sphi 0, %s98
      %s100 = sphi 0, %s98
      %s101 = sphi 0, %s100
      %s115 = sphi 0, %s101
      %s121 = sphi 0, %s123
      %s124 = sphi 0, %s121
      %s125 = sphi 0, %s124
      %s141 = sphi 0, %s125
    $region4: #{tpu_custom_call.1} parent=1 // loop_header_branch
      %20 = sbr.rel (%p18) target = $region8
    $region5: #{tpu_custom_call.1} parent=1 // loop_body
      %s22 = ssub.s32 %s17, 1
      %s23 = ssub.s32 %s17, 2
      %s24 = sadd.s32 %s17, 1
      %s25 = ssub.s32 %s17, %s24
      %p26 = scmp.eq.s32.totalorder %s25, 0
      %s28 = sadd.s32 %s27, 1
      %s29 = scalar_select %p26, %s27, %s28
      %p32 = pneg %p26
      %p33 = scmp.eq.s32.totalorder %s17, 3
      %p34 = por %p32, %p33
      %p35 = scmp.ne.s32.totalorder %s27, %s30
      %p36 = scmp.eq.s32.totalorder %s17, 0
      %p37 = por %p35, %p36
      %p38 = scmp.ne.s32.totalorder %s27, %s30
      %p39 = scmp.eq.s32.totalorder %s22, 3
      %p40 = por %p38, %p39
      %p41 = scmp.ne.s32.totalorder %s30, %s31
      %p42 = scmp.eq.s32.totalorder %s22, 0
      %p43 = por %p41, %p42
      %p44 = scmp.ne.s32.totalorder %s30, %s31
      %p45 = scmp.eq.s32.totalorder %s23, 3
      %p46 = por %p44, %p45
      %p48 = scmp.ne.s32.totalorder %s31, %s47
      %p49 = scmp.eq.s32.totalorder %s23, 0
      %p50 = por %p48, %p49
      %s51 = ssub.s32 %s17, %s24
      %p52 = scmp.eq.s32.totalorder %s51, 0
      %s54 = sadd.s32 %s53, 1
      %s55 = scalar_select %p52, %s53, %s54
      %p58 = pneg %p52
      %p59 = scmp.eq.s32.totalorder %s17, 3
      %p60 = por %p58, %p59
      %p61 = scmp.ne.s32.totalorder %s53, %s56
      %p62 = scmp.eq.s32.totalorder %s17, 0
      %p63 = por %p61, %p62
      %p64 = scmp.ne.s32.totalorder %s53, %s56
      %p65 = scmp.eq.s32.totalorder %s22, 3
      %p66 = por %p64, %p65
      %p67 = scmp.ne.s32.totalorder %s56, %s57
      %p68 = scmp.eq.s32.totalorder %s22, 0
      %p69 = por %p67, %p68
      %p70 = scmp.ne.s32.totalorder %s56, %s57
      %p71 = scmp.eq.s32.totalorder %s23, 3
      %p72 = por %p70, %p71
      %p74 = scmp.ne.s32.totalorder %s57, %s73
      %p75 = scmp.eq.s32.totalorder %s23, 0
      %p76 = por %p74, %p75
      %s78 = sadd.s32 %s77, 1
      %p81 = scmp.eq.s32.totalorder %s17, 3
      %p82 = scmp.ne.s32.totalorder %s77, %s79
      %p83 = scmp.eq.s32.totalorder %s17, 0
      %p84 = por %p82, %p83
      %p85 = scmp.ne.s32.totalorder %s77, %s79
      %p86 = scmp.eq.s32.totalorder %s22, 3
      %p87 = por %p85, %p86
      %p88 = scmp.ne.s32.totalorder %s79, %s80
      %p89 = scmp.eq.s32.totalorder %s22, 0
      %p90 = por %p88, %p89
      %p91 = scmp.ne.s32.totalorder %s79, %s80
      %p92 = scmp.eq.s32.totalorder %s23, 3
      %p93 = por %p91, %p92
      %p95 = scmp.ne.s32.totalorder %s80, %s94
      %p96 = scmp.eq.s32.totalorder %s23, 0
      %p97 = por %p95, %p96
      %s99 = sadd.s32 %s98, 1
      %p102 = scmp.eq.s32.totalorder %s17, 3
      %p103 = scmp.ne.s32.totalorder %s98, %s100
      %p104 = scmp.eq.s32.totalorder %s17, 0
      %p105 = por %p103, %p104
      %p106 = scmp.ne.s32.totalorder %s98, %s100
      %p107 = scmp.eq.s32.totalorder %s22, 3
      %p108 = por %p106, %p107
      %p109 = scmp.ne.s32.totalorder %s100, %s101
      %p110 = scmp.eq.s32.totalorder %s22, 0
      %p111 = por %p109, %p110
      %p112 = scmp.ne.s32.totalorder %s100, %s101
      %p113 = scmp.eq.s32.totalorder %s23, 3
      %p114 = por %p112, %p113
      %p116 = scmp.ne.s32.totalorder %s101, %s115
      %p117 = scmp.eq.s32.totalorder %s23, 0
      %p118 = por %p116, %p117
      %s119 = ssub.s32 %s17, %s24
      %p120 = scmp.eq.s32.totalorder %s119, 0
      %s122 = sadd.s32 %s121, 1
      %s123 = scalar_select %p120, %s121, %s122
      %p126 = pneg %p120
      %p127 = scmp.eq.s32.totalorder %s17, 3
      %p128 = por %p126, %p127
      %p129 = scmp.ne.s32.totalorder %s121, %s124
      %p130 = scmp.eq.s32.totalorder %s17, 0
      %p131 = por %p129, %p130
      %p132 = scmp.ne.s32.totalorder %s121, %s124
      %p133 = scmp.eq.s32.totalorder %s22, 3
      %p134 = por %p132, %p133
      %p135 = scmp.ne.s32.totalorder %s124, %s125
      %p136 = scmp.eq.s32.totalorder %s22, 0
      %p137 = por %p135, %p136
      %p138 = scmp.ne.s32.totalorder %s124, %s125
      %p139 = scmp.eq.s32.totalorder %s23, 3
      %p140 = por %p138, %p139
      %p142 = scmp.ne.s32.totalorder %s125, %s141
      %p143 = scmp.eq.s32.totalorder %s23, 0
      %p144 = por %p142, %p143
      %p145 = scmp.le.s32.totalorder 1, %s17
      %p146 = scmp.lt.s32.totalorder %s17, 5
      %p147 = pnand %p145, %p146
      %p148 = pneg %p147
      // Predicated region
      $region9: #{tpu_custom_call.1} parent=5 // pred_check
        _
      $region10: #{tpu_custom_call.1} parent=5 // pred_check_branch
        %150 = sbr.rel (%p147) target = $region12
      $region11: #{tpu_custom_call.1} parent=5 // pred_region
        %s151 = ssub.s32 %s17, 1
        // Predicated region
        $region13: #{tpu_custom_call.1} parent=11 // pred_check
          %p152 = pneg %p90
        $region14: #{tpu_custom_call.1} parent=11 // pred_check_branch
          %154 = sbr.rel (%p152) target = $region16
        $region15: #{tpu_custom_call.1} parent=11 // pred_region
          _
        $region16: #{tpu_custom_call.1} parent=11 // pred_fallthru
          _
        // Predicated region
        $region17: #{tpu_custom_call.1} parent=11 // pred_check
          %p155 = pneg %p111
        $region18: #{tpu_custom_call.1} parent=11 // pred_check_branch
          %157 = sbr.rel (%p155) target = $region20
        $region19: #{tpu_custom_call.1} parent=11 // pred_region
          %159 = vsyncadd [#allocation5], 0
          %s161 = sshll.u32 %s3, 4
          %s162 = int_to_ptr.vmem [resolvable:$true] %s161
          %164 = dma.vmem_to_smem %s162, 16, [#allocation6], [#allocation5]
        $region20: #{tpu_custom_call.1} parent=11 // pred_fallthru
          _
      $region12: #{tpu_custom_call.1} parent=5 // pred_fallthru
        _
      %p165 = scmp.lt.s32.totalorder %s17, 4
      // Predicated region
      $region21: #{tpu_custom_call.1} parent=5 // pred_check
        %p166 = pneg %p165
      $region22: #{tpu_custom_call.1} parent=5 // pred_check_branch
        %168 = sbr.rel (%p166) target = $region24
      $region23: #{tpu_custom_call.1} parent=5 // pred_region
        // Predicated region
        $region25: #{tpu_custom_call.1} parent=23 // pred_check
          %p169 = pneg %p37
        $region26: #{tpu_custom_call.1} parent=23 // pred_check_branch
          %171 = sbr.rel (%p169) target = $region28
        $region27: #{tpu_custom_call.1} parent=23 // pred_region
          %s172 = sand.u32 %s27, 1
          %s173 = scalar_lea.sflag [#allocation3], %s172
          %s174 = sand.u32 %s27, 1
          %s175 = smul.addr %s174, 32
          %s176 = scalar_lea.vmem [#allocation2], %s175
          %s177 = smul.u32 2, %s17
          %s178 = ssub.s32 7, %s177
          %p179 = scmp.lt.s32.totalorder %s178, 2
          %s180 = scalar_select %p179, %s178, 2
          %s181 = smul.u32 8, %s180
          %s182 = smul.u32 %s181, 2
          %s183 = ssub.s32 32, %s182
          %s184 = sshll.u32 %s183, 4
          %185 = vsyncadd %s173, %s184
          %p186 = scmp.ne.s32.totalorder 0, %s182
          %s187 = smul.addr %s177, 2
          %s188 = smul.addr %s187, 8
          %s189 = scalar_lea.hbm %s0, %s188
          %s190 = smul.u32 16, %s180
          %s191 = sshll.u32 %s189, 4
          %s192 = int_to_ptr.hbm [resolvable:$true] %s191
          %s193 = sshll.u32 %s176, 4
          %s194 = int_to_ptr.vmem [resolvable:$true] %s193
          %s195 = sshll.u32 %s190, 4
          %199 = dma.hbm_to_vmem [thread:$0]  (%p186), %s192, %s195, %s194, %s173, 256, 256, 16
        $region28: #{tpu_custom_call.1} parent=23 // pred_fallthru
          _
        // Predicated region
        $region29: #{tpu_custom_call.1} parent=23 // pred_check
          %p200 = pneg %p63
        $region30: #{tpu_custom_call.1} parent=23 // pred_check_branch
          %202 = sbr.rel (%p200) target = $region32
        $region31: #{tpu_custom_call.1} parent=23 // pred_region
          %s203 = smul.u32 2, %s17
          %s204 = ssub.s32 7, %s203
          %p205 = scmp.lt.s32.totalorder %s204, 2
          %s206 = scalar_select %p205, %s204, 2
          %s207 = smul.u32 8, %s206
          %p208 = scmp.lt.s32.totalorder %s203, 6
          %s209 = scalar_select %p208, %s203, 6
          %s210 = smul.addr %s209, 8
          %s211 = scalar_lea.vmem %s1, %s210
          %s212 = smul.u32 2, %s17
          %s213 = ssub.s32 7, %s212
          %p214 = scmp.lt.s32.totalorder %s213, 2
          %s215 = scalar_select %p214, %s213, 2
          %s216 = smul.u32 8, %s215
        $region32: #{tpu_custom_call.1} parent=23 // pred_fallthru
          _
      $region24: #{tpu_custom_call.1} parent=5 // pred_fallthru
        _
      %p217 = scmp.le.s32.totalorder 1, %s17
      %p218 = scmp.lt.s32.totalorder %s17, 5
      %p219 = pnand %p217, %p218
      %p220 = pneg %p219
      // Predicated region
      $region33: #{tpu_custom_call.1} parent=5 // pred_check
        _
      $region34: #{tpu_custom_call.1} parent=5 // pred_check_branch
        %222 = sbr.rel (%p219) target = $region36
      $region35: #{tpu_custom_call.1} parent=5 // pred_region
        %s223 = ssub.s32 %s17, 1
        %s224 = sand.u32 %s30, 1
        %s225 = scalar_lea.sflag [#allocation3], %s224
        %s226 = sand.u32 %s30, 1
        %s227 = smul.addr %s226, 32
        %s228 = scalar_lea.vmem [#allocation2], %s227
        // Predicated region
        $region37: #{tpu_custom_call.1} parent=35 // pred_check
          %p229 = pneg %p43
        $region38: #{tpu_custom_call.1} parent=35 // pred_check_branch
          %231 = sbr.rel (%p229) target = $region40
        $region39: #{tpu_custom_call.1} parent=35 // pred_region
          %233 = dma.done %s225, 512
        $region40: #{tpu_custom_call.1} parent=35 // pred_fallthru
          _
        // Predicated region
        $region41: #{tpu_custom_call.1} parent=35 // pred_check
          %p234 = pneg %p111
        $region42: #{tpu_custom_call.1} parent=35 // pred_check_branch
          %236 = sbr.rel (%p234) target = $region44
        $region43: #{tpu_custom_call.1} parent=35 // pred_region
          %238 = dma.done [#allocation5], 16
        $region44: #{tpu_custom_call.1} parent=35 // pred_fallthru
          _
        %239 = sfence
        %s240 = sand.u32 %s30, 1
        %s241 = scalar_lea.sflag [#allocation3], %s240
        %s242 = sand.u32 %s30, 1
        %s243 = smul.addr %s242, 32
        %s244 = scalar_lea.vmem [#allocation2], %s243
        %p245 = pneg %p43
        %p246 = pneg %p40
        %s247 = smul.u32 2, %s22
        %s248 = ssub.s32 7, %s247
        %p249 = scmp.lt.s32.totalorder %s248, 2
        %s250 = scalar_select %p249, %s248, 2
        %s251 = smul.u32 8, %s250
        %p252 = scmp.lt.s32.totalorder %s247, 6
        %s253 = scalar_select %p252, %s247, 6
        %s254 = smul.addr %s253, 8
        %s255 = scalar_lea.vmem %s1, %s254
        %p256 = pneg %p69
        %p257 = pneg %p66
        %p258 = pneg %p90
        %p259 = pneg %p87
        %p260 = pneg %p111
        %p261 = pneg %p108
        %p262 = pneg %p137
        %p263 = pneg %p134
        %s264 = sand.u32 %s124, 1
        %s265 = scalar_lea.sflag [#allocation4], %s264
        %s266 = sand.u32 %s124, 1
        %s267 = smul.addr %s266, 32
        %s268 = scalar_lea.vmem [#allocation7], %s267
        %s269 = smul.u32 2, %s22
        %s270 = ssub.s32 7, %s269
        %p271 = scmp.lt.s32.totalorder %s270, 2
        %s272 = scalar_select %p271, %s270, 2
        %s273 = smul.u32 8, %s272
        %s274 = smul.u32 %s273, 2
        %s275 = smul.u32 2, %s22
        %s276 = ssub.s32 7, %s275
        %p277 = scmp.lt.s32.totalorder %s276, 2
        %s278 = scalar_select %p277, %s276, 2
        %s279 = smul.u32 8, %s278
        %p280 = scmp.lt.s32.totalorder %s275, 6
        %s281 = scalar_select %p280, %s275, 6
        %s282 = smul.addr %s281, 8
        %s283 = scalar_lea.vmem %s1, %s282
        %s284 = smul.u32 2, %s22
        %s285 = ssub.s32 7, %s284
        %p286 = scmp.lt.s32.totalorder %s285, 2
        %s287 = scalar_select %p286, %s285, 2
        %s288 = smul.u32 8, %s287
        %s289 = smul.u32 2, %s22
        %s290 = ssub.s32 7, %s289
        %p291 = scmp.lt.s32.totalorder %s290, 2
        %s292 = scalar_select %p291, %s290, 2
        %s293 = smul.u32 8, %s292
        %s294 = smul.u32 %s293, 2
        %s295 = sld [smem:[#allocation6]]
        %s296 = sld [smem:[#allocation6 + $0x1]]
        %v297 = vld [vmem:[%s283] sm:$0xff]
        %v298 = vld [vmem:[%s283 + $0x8] sm:$0xff]
        %v299 = vstv %s295
        %v300 = vsub.f32 %v297, %v299
        %v301 = vsub.f32 %v298, %v299
        %v302 = vmax.f32 %v300, 1e-08
        %v303 = vmax.f32 %v301, 1e-08
        %v304 = vstv %s296
        %v305 = vmul.f32 %v302, %v304
        %v306 = vmul.f32 %v303, %v304
        %v307 = vld [vmem:[%s2] sm:$0x1]
        %309 = vset.pattern.permute.xlu0 0
        %310 = vperm.xlu0 %309, %v305
        %v311 = vpop.permute.xlu0 %310
        %314 = vset.pattern.permute.xlu0 0
        %315 = vperm.xlu0 %314, %v306
        %v316 = vpop.permute.xlu0 %315
        %v319 = vperm.slane %v307, 0
        %v321 = vmul.f32 %v311, %v319
        %v322 = vmul.f32 %v316, %v319
        %v323 = vand.u32 2147483647, %v321
        %vm324 = vcmp.le.f32.partialorder %v323, 0.7853982
        %vm325 = vcmp.lt.s32.totalorder %v321, 0
        %v326 = vand.u32 %v321, 2139095040
        %v327 = vshrl.u32 %v326, 23
        %v328 = vsub.s32 %v327, 127
        %v329 = vand.u32 2147483647, %v321
        %v330 = vand.u32 %v329, 8388607
        %v331 = vor.u32 %v330, 8388608
        %v332 = vsub.s32 0, %v331
        %v333 = vadd.s32 %v328, 1
        %vm334 = vcmp.gt.s32.totalorder %v333, 0
        %v335 = vsel %vm334, %v333, 0
        %v336 = vshrl.u32 %v335, 5
        %v337 = vand.u32 %v335, 31
        %v338 = vsub.s32 32, %v337
        %v339 = vshrl.u32 683565275, %v338
        %v340 = vshll.u32 683565275, %v337
        %v341 = vshrl.u32 2475754826, %v338
        %v342 = vor.u32 %v340, %v341
        %v343 = vshll.u32 2475754826, %v337
        %v344 = vshrl.u32 2131351028, %v338
        %v345 = vor.u32 %v343, %v344
        %v346 = vshll.u32 2131351028, %v337
        %v347 = vshrl.u32 2102212464, %v338
        %v348 = vor.u32 %v346, %v347
        %v349 = vshll.u32 2102212464, %v337
        %v350 = vshrl.u32 920167782, %v338
        %v351 = vor.u32 %v349, %v350
        %v352 = vshll.u32 920167782, %v337
        %v353 = vshrl.u32 1326507024, %v338
        %v354 = vor.u32 %v352, %v353
        %vm355 = vcmp.lt.s32.totalorder %v336, 1
        %vm356 = vcmp.lt.s32.totalorder %v336, 2
        %vm357 = vcmp.lt.s32.totalorder %v336, 3
        %vm358 = vcmp.lt.s32.totalorder %v336, 4
        %v359 = vsel %vm355, %v339, %v342
        %v360 = vsel %vm358, %v348, 2102212464
        %v361 = vsel %vm357, %v345, %v360
        %v362 = vsel %vm356, %v359, %v361
        %v363 = vsel %vm355, %v342, %v345
        %v364 = vsel %vm358, %v351, 920167782
        %v365 = vsel %vm357, %v348, %v364
        %v366 = vsel %vm356, %v363, %v365
        %v367 = vsel %vm355, %v345, %v348
        %v368 = vsel %vm358, %v354, 1326507024
        %v369 = vsel %vm357, %v351, %v368
        %v370 = vsel %vm356, %v367, %v369
        %v371 = vshll.u32 %v331, 8
        %v372 = vand.u32 %v371, 65535
        %v373 = vshrl.u32 %v371, 16
        %v374 = vand.u32 %v370, 65535
        %v375 = vshrl.u32 %v370, 16
        %v376 = vmul.u32 %v372, %v374
        %v377 = vmul.u32 %v372, %v375
        %v378 = vmul.u32 %v373, %v374
        %v379 = vmul.u32 %v373, %v375
        %v380 = vshll.u32 %v377, 16
        %v381 = vshrl.u32 %v377, 16
        %v382 = vshll.u32 %v378, 16
        %v383 = vshrl.u32 %v378, 16
        %vm384 = vc.u32 %v376, %v380
        %v385 = vsel %vm384, 1, 0
        %v386 = vadd.s32 %v376, %v380
        %v387 = vadd.s32 %v379, %v385
        %vm388 = vc.u32 %v386, %v382
        %v389 = vsel %vm388, 1, 0
        %v390 = vadd.s32 %v386, %v382
        %v391 = vadd.s32 %v387, %v389
        %v392 = vadd.s32 %v391, %v381
        %v393 = vadd.s32 %v392, %v383
        %v394 = vand.u32 %v371, 65535
        %v395 = vshrl.u32 %v371, 16
        %v396 = vand.u32 %v366, 65535
        %v397 = vshrl.u32 %v366, 16
        %v398 = vmul.u32 %v394, %v396
        %v399 = vmul.u32 %v394, %v397
        %v400 = vmul.u32 %v395, %v396
        %v401 = vmul.u32 %v395, %v397
        %v402 = vshll.u32 %v399, 16
        %v403 = vshrl.u32 %v399, 16
        %v404 = vshll.u32 %v400, 16
        %v405 = vshrl.u32 %v400, 16
        %vm406 = vc.u32 %v398, %v402
        %v407 = vsel %vm406, 1, 0
        %v408 = vadd.s32 %v398, %v402
        %v409 = vadd.s32 %v401, %v407
        %vm410 = vc.u32 %v408, %v404
        %v411 = vsel %vm410, 1, 0
        %v412 = vadd.s32 %v408, %v404
        %v413 = vadd.s32 %v409, %v411
        %v414 = vadd.s32 %v413, %v403
        %v415 = vadd.s32 %v414, %v405
        %v416 = vmul.u32 %v371, %v362
        %v417 = vadd.s32 %v393, %v412
        %vm418 = vc.u32 %v393, %v412
        %v419 = vadd.s32 %v415, 1
        %v420 = vsel %vm418, %v419, %v415
        %v421 = vadd.s32 %v416, %v420
        %v422 = vadd.s32 %v421, 536870912
        %v423 = vshrl.u32 %v422, 30
        %v424 = vshll.u32 %v423, 30
        %v425 = vsub.s32 %v421, %v424
        %vm426 = vcmp.lt.s32.totalorder %v425, 0
        %v427 = vsub.s32 0, %v425
        %v428 = vsel %vm426, %v427, %v425
        %v429 = vclz %v428
        %v430 = vsub.s32 %v429, 2
        %vm431 = vcmp.gt.s32.totalorder 0, %v430
        %v432 = vsel %vm431, 0, %v430
        %v433 = vsub.s32 32, %v432
        %v434 = vshll.u32 %v425, %v432
        %v435 = vshrl.u32 %v417, %v433
        %v436 = vor.u32 %v434, %v435
        %v437 = vsub.s32 4294967266, %v432
        %v438 = vadd.s32 %v437, 127
        %v439 = vshll.u32 %v438, 23
        %v440 = vor.u32 4788187, %v439
        %v441 = vand.u32 2147483647, %v440
        %v443 = vcvt.s32.f32 %v436
        %v444 = vmul.f32 %v443, %v441
        %v445 = vxor.u32 %v444, 2147483648
        %v446 = vsel %vm325, %v445, %v444
        %v447 = vsub.s32 4, %v423
        %v448 = vsel %vm325, %v447, %v423
        %v449 = vsel %vm324, %v321, %v446
        %v450 = vsel %vm324, 0, %v448
        %v451 = vmul.f32 %v449, %v449
        %v452 = vmul.f32 %v451, -0.001358992
        %v453 = vadd.f32 %v452, 0.041655596
        %v454 = vmul.f32 %v451, %v453
        %v455 = vadd.f32 %v454, -0.4999988
        %v456 = vmul.f32 %v451, %v455
        %v457 = vadd.f32 1.0, %v456
        %v458 = vmul.f32 %v449, %v449
        %v459 = vmul.f32 %v458, -0.00019511016
        %v460 = vadd.f32 %v459, 0.008332121
        %v461 = vmul.f32 %v458, %v460
        %v462 = vadd.f32 %v461, -0.16666654
        %v463 = vmul.f32 %v458, %v462
        %v464 = vadd.f32 %v463, 1.0
        %v465 = vmul.f32 %v464, %v449
        %vm466 = vweird.f32 %v321
        %v467 = vand.u32 %v450, 3
        %vm468 = vcmp.lt.s32.totalorder %v467, 2
        %vm469 = vcmp.eq.s32.totalorder %v467, 0
        %v470 = vxor.u32 %v465, 2147483648
        %v471 = vsel %vm469, %v457, %v470
        %vm472 = vcmp.eq.s32.totalorder %v467, 2
        %v473 = vxor.u32 %v457, 2147483648
        %v474 = vsel %vm472, %v473, %v465
        %v475 = vsel %vm468, %v471, %v474
        %v476 = vsel %vm466, nan, %v475
        %v477 = vand.u32 2147483647, %v322
        %vm478 = vcmp.le.f32.partialorder %v477, 0.7853982
        %vm479 = vcmp.lt.s32.totalorder %v322, 0
        %v480 = vand.u32 %v322, 2139095040
        %v481 = vshrl.u32 %v480, 23
        %v482 = vsub.s32 %v481, 127
        %v483 = vand.u32 2147483647, %v322
        %v484 = vand.u32 %v483, 8388607
        %v485 = vor.u32 %v484, 8388608
        %v486 = vsub.s32 0, %v485
        %v487 = vadd.s32 %v482, 1
        %vm488 = vcmp.gt.s32.totalorder %v487, 0
        %v489 = vsel %vm488, %v487, 0
        %v490 = vshrl.u32 %v489, 5
        %v491 = vand.u32 %v489, 31
        %v492 = vsub.s32 32, %v491
        %v493 = vshrl.u32 683565275, %v492
        %v494 = vshll.u32 683565275, %v491
        %v495 = vshrl.u32 2475754826, %v492
        %v496 = vor.u32 %v494, %v495
        %v497 = vshll.u32 2475754826, %v491
        %v498 = vshrl.u32 2131351028, %v492
        %v499 = vor.u32 %v497, %v498
        %v500 = vshll.u32 2131351028, %v491
        %v501 = vshrl.u32 2102212464, %v492
        %v502 = vor.u32 %v500, %v501
        %v503 = vshll.u32 2102212464, %v491
        %v504 = vshrl.u32 920167782, %v492
        %v505 = vor.u32 %v503, %v504
        %v506 = vshll.u32 920167782, %v491
        %v507 = vshrl.u32 1326507024, %v492
        %v508 = vor.u32 %v506, %v507
        %vm509 = vcmp.lt.s32.totalorder %v490, 1
        %vm510 = vcmp.lt.s32.totalorder %v490, 2
        %vm511 = vcmp.lt.s32.totalorder %v490, 3
        %vm512 = vcmp.lt.s32.totalorder %v490, 4
        %v513 = vsel %vm509, %v493, %v496
        %v514 = vsel %vm512, %v502, 2102212464
        %v515 = vsel %vm511, %v499, %v514
        %v516 = vsel %vm510, %v513, %v515
        %v517 = vsel %vm509, %v496, %v499
        %v518 = vsel %vm512, %v505, 920167782
        %v519 = vsel %vm511, %v502, %v518
        %v520 = vsel %vm510, %v517, %v519
        %v521 = vsel %vm509, %v499, %v502
        %v522 = vsel %vm512, %v508, 1326507024
        %v523 = vsel %vm511, %v505, %v522
        %v524 = vsel %vm510, %v521, %v523
        %v525 = vshll.u32 %v485, 8
        %v526 = vand.u32 %v525, 65535
        %v527 = vshrl.u32 %v525, 16
        %v528 = vand.u32 %v524, 65535
        %v529 = vshrl.u32 %v524, 16
        %v530 = vmul.u32 %v526, %v528
        %v531 = vmul.u32 %v526, %v529
        %v532 = vmul.u32 %v527, %v528
        %v533 = vmul.u32 %v527, %v529
        %v534 = vshll.u32 %v531, 16
        %v535 = vshrl.u32 %v531, 16
        %v536 = vshll.u32 %v532, 16
        %v537 = vshrl.u32 %v532, 16
        %vm538 = vc.u32 %v530, %v534
        %v539 = vsel %vm538, 1, 0
        %v540 = vadd.s32 %v530, %v534
        %v541 = vadd.s32 %v533, %v539
        %vm542 = vc.u32 %v540, %v536
        %v543 = vsel %vm542, 1, 0
        %v544 = vadd.s32 %v540, %v536
        %v545 = vadd.s32 %v541, %v543
        %v546 = vadd.s32 %v545, %v535
        %v547 = vadd.s32 %v546, %v537
        %v548 = vand.u32 %v525, 65535
        %v549 = vshrl.u32 %v525, 16
        %v550 = vand.u32 %v520, 65535
        %v551 = vshrl.u32 %v520, 16
        %v552 = vmul.u32 %v548, %v550
        %v553 = vmul.u32 %v548, %v551
        %v554 = vmul.u32 %v549, %v550
        %v555 = vmul.u32 %v549, %v551
        %v556 = vshll.u32 %v553, 16
        %v557 = vshrl.u32 %v553, 16
        %v558 = vshll.u32 %v554, 16
        %v559 = vshrl.u32 %v554, 16
        %vm560 = vc.u32 %v552, %v556
        %v561 = vsel %vm560, 1, 0
        %v562 = vadd.s32 %v552, %v556
        %v563 = vadd.s32 %v555, %v561
        %vm564 = vc.u32 %v562, %v558
        %v565 = vsel %vm564, 1, 0
        %v566 = vadd.s32 %v562, %v558
        %v567 = vadd.s32 %v563, %v565
        %v568 = vadd.s32 %v567, %v557
        %v569 = vadd.s32 %v568, %v559
        %v570 = vmul.u32 %v525, %v516
        %v571 = vadd.s32 %v547, %v566
        %vm572 = vc.u32 %v547, %v566
        %v573 = vadd.s32 %v569, 1
        %v574 = vsel %vm572, %v573, %v569
        %v575 = vadd.s32 %v570, %v574
        %v576 = vadd.s32 %v575, 536870912
        %v577 = vshrl.u32 %v576, 30
        %v578 = vshll.u32 %v577, 30
        %v579 = vsub.s32 %v575, %v578
        %vm580 = vcmp.lt.s32.totalorder %v579, 0
        %v581 = vsub.s32 0, %v579
        %v582 = vsel %vm580, %v581, %v579
        %v583 = vclz %v582
        %v584 = vsub.s32 %v583, 2
        %vm585 = vcmp.gt.s32.totalorder 0, %v584
        %v586 = vsel %vm585, 0, %v584
        %v587 = vsub.s32 32, %v586
        %v588 = vshll.u32 %v579, %v586
        %v589 = vshrl.u32 %v571, %v587
        %v590 = vor.u32 %v588, %v589
        %v591 = vsub.s32 4294967266, %v586
        %v592 = vadd.s32 %v591, 127
        %v593 = vshll.u32 %v592, 23
        %v594 = vor.u32 4788187, %v593
        %v595 = vand.u32 2147483647, %v594
        %v597 = vcvt.s32.f32 %v590
        %v598 = vmul.f32 %v597, %v595
        %v599 = vxor.u32 %v598, 2147483648
        %v600 = vsel %vm479, %v599, %v598
        %v601 = vsub.s32 4, %v577
        %v602 = vsel %vm479, %v601, %v577
        %v603 = vsel %vm478, %v322, %v600
        %v604 = vsel %vm478, 0, %v602
        %v605 = vmul.f32 %v603, %v603
        %v606 = vmul.f32 %v605, -0.001358992
        %v607 = vadd.f32 %v606, 0.041655596
        %v608 = vmul.f32 %v605, %v607
        %v609 = vadd.f32 %v608, -0.4999988
        %v610 = vmul.f32 %v605, %v609
        %v611 = vadd.f32 1.0, %v610
        %v612 = vmul.f32 %v603, %v603
        %v613 = vmul.f32 %v612, -0.00019511016
        %v614 = vadd.f32 %v613, 0.008332121
        %v615 = vmul.f32 %v612, %v614
        %v616 = vadd.f32 %v615, -0.16666654
        %v617 = vmul.f32 %v612, %v616
        %v618 = vadd.f32 %v617, 1.0
        %v619 = vmul.f32 %v618, %v603
        %vm620 = vweird.f32 %v322
        %v621 = vand.u32 %v604, 3
        %vm622 = vcmp.lt.s32.totalorder %v621, 2
        %vm623 = vcmp.eq.s32.totalorder %v621, 0
        %v624 = vxor.u32 %v619, 2147483648
        %v625 = vsel %vm623, %v611, %v624
        %vm626 = vcmp.eq.s32.totalorder %v621, 2
        %v627 = vxor.u32 %v611, 2147483648
        %v628 = vsel %vm626, %v627, %v619
        %v629 = vsel %vm622, %v625, %v628
        %v630 = vsel %vm620, nan, %v629
        %v631 = vand.u32 2147483647, %v321
        %vm632 = vcmp.le.f32.partialorder %v631, 0.7853982
        %vm633 = vcmp.lt.s32.totalorder %v321, 0
        %v634 = vand.u32 %v321, 2139095040
        %v635 = vshrl.u32 %v634, 23
        %v636 = vsub.s32 %v635, 127
        %v637 = vand.u32 2147483647, %v321
        %v638 = vand.u32 %v637, 8388607
        %v639 = vor.u32 %v638, 8388608
        %v640 = vsub.s32 0, %v639
        %v641 = vadd.s32 %v636, 1
        %vm642 = vcmp.gt.s32.totalorder %v641, 0
        %v643 = vsel %vm642, %v641, 0
        %v644 = vshrl.u32 %v643, 5
        %v645 = vand.u32 %v643, 31
        %v646 = vsub.s32 32, %v645
        %v647 = vshrl.u32 683565275, %v646
        %v648 = vshll.u32 683565275, %v645
        %v649 = vshrl.u32 2475754826, %v646
        %v650 = vor.u32 %v648, %v649
        %v651 = vshll.u32 2475754826, %v645
        %v652 = vshrl.u32 2131351028, %v646
        %v653 = vor.u32 %v651, %v652
        %v654 = vshll.u32 2131351028, %v645
        %v655 = vshrl.u32 2102212464, %v646
        %v656 = vor.u32 %v654, %v655
        %v657 = vshll.u32 2102212464, %v645
        %v658 = vshrl.u32 920167782, %v646
        %v659 = vor.u32 %v657, %v658
        %v660 = vshll.u32 920167782, %v645
        %v661 = vshrl.u32 1326507024, %v646
        %v662 = vor.u32 %v660, %v661
        %vm663 = vcmp.lt.s32.totalorder %v644, 1
        %vm664 = vcmp.lt.s32.totalorder %v644, 2
        %vm665 = vcmp.lt.s32.totalorder %v644, 3
        %vm666 = vcmp.lt.s32.totalorder %v644, 4
        %v667 = vsel %vm663, %v647, %v650
        %v668 = vsel %vm666, %v656, 2102212464
        %v669 = vsel %vm665, %v653, %v668
        %v670 = vsel %vm664, %v667, %v669
        %v671 = vsel %vm663, %v650, %v653
        %v672 = vsel %vm666, %v659, 920167782
        %v673 = vsel %vm665, %v656, %v672
        %v674 = vsel %vm664, %v671, %v673
        %v675 = vsel %vm663, %v653, %v656
        %v676 = vsel %vm666, %v662, 1326507024
        %v677 = vsel %vm665, %v659, %v676
        %v678 = vsel %vm664, %v675, %v677
        %v679 = vshll.u32 %v639, 8
        %v680 = vand.u32 %v679, 65535
        %v681 = vshrl.u32 %v679, 16
        %v682 = vand.u32 %v678, 65535
        %v683 = vshrl.u32 %v678, 16
        %v684 = vmul.u32 %v680, %v682
        %v685 = vmul.u32 %v680, %v683
        %v686 = vmul.u32 %v681, %v682
        %v687 = vmul.u32 %v681, %v683
        %v688 = vshll.u32 %v685, 16
        %v689 = vshrl.u32 %v685, 16
        %v690 = vshll.u32 %v686, 16
        %v691 = vshrl.u32 %v686, 16
        %vm692 = vc.u32 %v684, %v688
        %v693 = vsel %vm692, 1, 0
        %v694 = vadd.s32 %v684, %v688
        %v695 = vadd.s32 %v687, %v693
        %vm696 = vc.u32 %v694, %v690
        %v697 = vsel %vm696, 1, 0
        %v698 = vadd.s32 %v694, %v690
        %v699 = vadd.s32 %v695, %v697
        %v700 = vadd.s32 %v699, %v689
        %v701 = vadd.s32 %v700, %v691
        %v702 = vand.u32 %v679, 65535
        %v703 = vshrl.u32 %v679, 16
        %v704 = vand.u32 %v674, 65535
        %v705 = vshrl.u32 %v674, 16
        %v706 = vmul.u32 %v702, %v704
        %v707 = vmul.u32 %v702, %v705
        %v708 = vmul.u32 %v703, %v704
        %v709 = vmul.u32 %v703, %v705
        %v710 = vshll.u32 %v707, 16
        %v711 = vshrl.u32 %v707, 16
        %v712 = vshll.u32 %v708, 16
        %v713 = vshrl.u32 %v708, 16
        %vm714 = vc.u32 %v706, %v710
        %v715 = vsel %vm714, 1, 0
        %v716 = vadd.s32 %v706, %v710
        %v717 = vadd.s32 %v709, %v715
        %vm718 = vc.u32 %v716, %v712
        %v719 = vsel %vm718, 1, 0
        %v720 = vadd.s32 %v716, %v712
        %v721 = vadd.s32 %v717, %v719
        %v722 = vadd.s32 %v721, %v711
        %v723 = vadd.s32 %v722, %v713
        %v724 = vmul.u32 %v679, %v670
        %v725 = vadd.s32 %v701, %v720
        %vm726 = vc.u32 %v701, %v720
        %v727 = vadd.s32 %v723, 1
        %v728 = vsel %vm726, %v727, %v723
        %v729 = vadd.s32 %v724, %v728
        %v730 = vadd.s32 %v729, 536870912
        %v731 = vshrl.u32 %v730, 30
        %v732 = vshll.u32 %v731, 30
        %v733 = vsub.s32 %v729, %v732
        %vm734 = vcmp.lt.s32.totalorder %v733, 0
        %v735 = vsub.s32 0, %v733
        %v736 = vsel %vm734, %v735, %v733
        %v737 = vclz %v736
        %v738 = vsub.s32 %v737, 2
        %vm739 = vcmp.gt.s32.totalorder 0, %v738
        %v740 = vsel %vm739, 0, %v738
        %v741 = vsub.s32 32, %v740
        %v742 = vshll.u32 %v733, %v740
        %v743 = vshrl.u32 %v725, %v741
        %v744 = vor.u32 %v742, %v743
        %v745 = vsub.s32 4294967266, %v740
        %v746 = vadd.s32 %v745, 127
        %v747 = vshll.u32 %v746, 23
        %v748 = vor.u32 4788187, %v747
        %v749 = vand.u32 2147483647, %v748
        %v751 = vcvt.s32.f32 %v744
        %v752 = vmul.f32 %v751, %v749
        %v753 = vxor.u32 %v752, 2147483648
        %v754 = vsel %vm633, %v753, %v752
        %v755 = vsub.s32 4, %v731
        %v756 = vsel %vm633, %v755, %v731
        %v757 = vsel %vm632, %v321, %v754
        %v758 = vsel %vm632, 0, %v756
        %v759 = vmul.f32 %v757, %v757
        %v760 = vmul.f32 %v759, -0.001358992
        %v761 = vadd.f32 %v760, 0.041655596
        %v762 = vmul.f32 %v759, %v761
        %v763 = vadd.f32 %v762, -0.4999988
        %v764 = vmul.f32 %v759, %v763
        %v765 = vadd.f32 1.0, %v764
        %v766 = vmul.f32 %v757, %v757
        %v767 = vmul.f32 %v766, -0.00019511016
        %v768 = vadd.f32 %v767, 0.008332121
        %v769 = vmul.f32 %v766, %v768
        %v770 = vadd.f32 %v769, -0.16666654
        %v771 = vmul.f32 %v766, %v770
        %v772 = vadd.f32 %v771, 1.0
        %v773 = vmul.f32 %v772, %v757
        %vm774 = vweird.f32 %v321
        %v775 = vadd.s32 %v758, 3
        %v776 = vand.u32 %v775, 3
        %vm777 = vcmp.lt.s32.totalorder %v776, 2
        %vm778 = vcmp.eq.s32.totalorder %v776, 0
        %v779 = vxor.u32 %v773, 2147483648
        %v780 = vsel %vm778, %v765, %v779
        %vm781 = vcmp.eq.s32.totalorder %v776, 2
        %v782 = vxor.u32 %v765, 2147483648
        %v783 = vsel %vm781, %v782, %v773
        %v784 = vsel %vm777, %v780, %v783
        %v785 = vsel %vm774, nan, %v784
        %v786 = vand.u32 2147483647, %v322
        %vm787 = vcmp.le.f32.partialorder %v786, 0.7853982
        %vm788 = vcmp.lt.s32.totalorder %v322, 0
        %v789 = vand.u32 %v322, 2139095040
        %v790 = vshrl.u32 %v789, 23
        %v791 = vsub.s32 %v790, 127
        %v792 = vand.u32 2147483647, %v322
        %v793 = vand.u32 %v792, 8388607
        %v794 = vor.u32 %v793, 8388608
        %v795 = vsub.s32 0, %v794
        %v796 = vadd.s32 %v791, 1
        %vm797 = vcmp.gt.s32.totalorder %v796, 0
        %v798 = vsel %vm797, %v796, 0
        %v799 = vshrl.u32 %v798, 5
        %v800 = vand.u32 %v798, 31
        %v801 = vsub.s32 32, %v800
        %v802 = vshrl.u32 683565275, %v801
        %v803 = vshll.u32 683565275, %v800
        %v804 = vshrl.u32 2475754826, %v801
        %v805 = vor.u32 %v803, %v804
        %v806 = vshll.u32 2475754826, %v800
        %v807 = vshrl.u32 2131351028, %v801
        %v808 = vor.u32 %v806, %v807
        %v809 = vshll.u32 2131351028, %v800
        %v810 = vshrl.u32 2102212464, %v801
        %v811 = vor.u32 %v809, %v810
        %v812 = vshll.u32 2102212464, %v800
        %v813 = vshrl.u32 920167782, %v801
        %v814 = vor.u32 %v812, %v813
        %v815 = vshll.u32 920167782, %v800
        %v816 = vshrl.u32 1326507024, %v801
        %v817 = vor.u32 %v815, %v816
        %vm818 = vcmp.lt.s32.totalorder %v799, 1
        %vm819 = vcmp.lt.s32.totalorder %v799, 2
        %vm820 = vcmp.lt.s32.totalorder %v799, 3
        %vm821 = vcmp.lt.s32.totalorder %v799, 4
        %v822 = vsel %vm818, %v802, %v805
        %v823 = vsel %vm821, %v811, 2102212464
        %v824 = vsel %vm820, %v808, %v823
        %v825 = vsel %vm819, %v822, %v824
        %v826 = vsel %vm818, %v805, %v808
        %v827 = vsel %vm821, %v814, 920167782
        %v828 = vsel %vm820, %v811, %v827
        %v829 = vsel %vm819, %v826, %v828
        %v830 = vsel %vm818, %v808, %v811
        %v831 = vsel %vm821, %v817, 1326507024
        %v832 = vsel %vm820, %v814, %v831
        %v833 = vsel %vm819, %v830, %v832
        %v834 = vshll.u32 %v794, 8
        %v835 = vand.u32 %v834, 65535
        %v836 = vshrl.u32 %v834, 16
        %v837 = vand.u32 %v833, 65535
        %v838 = vshrl.u32 %v833, 16
        %v839 = vmul.u32 %v835, %v837
        %v840 = vmul.u32 %v835, %v838
        %v841 = vmul.u32 %v836, %v837
        %v842 = vmul.u32 %v836, %v838
        %v843 = vshll.u32 %v840, 16
        %v844 = vshrl.u32 %v840, 16
        %v845 = vshll.u32 %v841, 16
        %v846 = vshrl.u32 %v841, 16
        %vm847 = vc.u32 %v839, %v843
        %v848 = vsel %vm847, 1, 0
        %v849 = vadd.s32 %v839, %v843
        %v850 = vadd.s32 %v842, %v848
        %vm851 = vc.u32 %v849, %v845
        %v852 = vsel %vm851, 1, 0
        %v853 = vadd.s32 %v849, %v845
        %v854 = vadd.s32 %v850, %v852
        %v855 = vadd.s32 %v854, %v844
        %v856 = vadd.s32 %v855, %v846
        %v857 = vand.u32 %v834, 65535
        %v858 = vshrl.u32 %v834, 16
        %v859 = vand.u32 %v829, 65535
        %v860 = vshrl.u32 %v829, 16
        %v861 = vmul.u32 %v857, %v859
        %v862 = vmul.u32 %v857, %v860
        %v863 = vmul.u32 %v858, %v859
        %v864 = vmul.u32 %v858, %v860
        %v865 = vshll.u32 %v862, 16
        %v866 = vshrl.u32 %v862, 16
        %v867 = vshll.u32 %v863, 16
        %v868 = vshrl.u32 %v863, 16
        %vm869 = vc.u32 %v861, %v865
        %v870 = vsel %vm869, 1, 0
        %v871 = vadd.s32 %v861, %v865
        %v872 = vadd.s32 %v864, %v870
        %vm873 = vc.u32 %v871, %v867
        %v874 = vsel %vm873, 1, 0
        %v875 = vadd.s32 %v871, %v867
        %v876 = vadd.s32 %v872, %v874
        %v877 = vadd.s32 %v876, %v866
        %v878 = vadd.s32 %v877, %v868
        %v879 = vmul.u32 %v834, %v825
        %v880 = vadd.s32 %v856, %v875
        %vm881 = vc.u32 %v856, %v875
        %v882 = vadd.s32 %v878, 1
        %v883 = vsel %vm881, %v882, %v878
        %v884 = vadd.s32 %v879, %v883
        %v885 = vadd.s32 %v884, 536870912
        %v886 = vshrl.u32 %v885, 30
        %v887 = vshll.u32 %v886, 30
        %v888 = vsub.s32 %v884, %v887
        %vm889 = vcmp.lt.s32.totalorder %v888, 0
        %v890 = vsub.s32 0, %v888
        %v891 = vsel %vm889, %v890, %v888
        %v892 = vclz %v891
        %v893 = vsub.s32 %v892, 2
        %vm894 = vcmp.gt.s32.totalorder 0, %v893
        %v895 = vsel %vm894, 0, %v893
        %v896 = vsub.s32 32, %v895
        %v897 = vshll.u32 %v888, %v895
        %v898 = vshrl.u32 %v880, %v896
        %v899 = vor.u32 %v897, %v898
        %v900 = vsub.s32 4294967266, %v895
        %v901 = vadd.s32 %v900, 127
        %v902 = vshll.u32 %v901, 23
        %v903 = vor.u32 4788187, %v902
        %v904 = vand.u32 2147483647, %v903
        %v906 = vcvt.s32.f32 %v899
        %v907 = vmul.f32 %v906, %v904
        %v908 = vxor.u32 %v907, 2147483648
        %v909 = vsel %vm788, %v908, %v907
        %v910 = vsub.s32 4, %v886
        %v911 = vsel %vm788, %v910, %v886
        %v912 = vsel %vm787, %v322, %v909
        %v913 = vsel %vm787, 0, %v911
        %v914 = vmul.f32 %v912, %v912
        %v915 = vmul.f32 %v914, -0.001358992
        %v916 = vadd.f32 %v915, 0.041655596
        %v917 = vmul.f32 %v914, %v916
        %v918 = vadd.f32 %v917, -0.4999988
        %v919 = vmul.f32 %v914, %v918
        %v920 = vadd.f32 1.0, %v919
        %v921 = vmul.f32 %v912, %v912
        %v922 = vmul.f32 %v921, -0.00019511016
        %v923 = vadd.f32 %v922, 0.008332121
        %v924 = vmul.f32 %v921, %v923
        %v925 = vadd.f32 %v924, -0.16666654
        %v926 = vmul.f32 %v921, %v925
        %v927 = vadd.f32 %v926, 1.0
        %v928 = vmul.f32 %v927, %v912
        %vm929 = vweird.f32 %v322
        %v930 = vadd.s32 %v913, 3
        %v931 = vand.u32 %v930, 3
        %vm932 = vcmp.lt.s32.totalorder %v931, 2
        %vm933 = vcmp.eq.s32.totalorder %v931, 0
        %v934 = vxor.u32 %v928, 2147483648
        %v935 = vsel %vm933, %v920, %v934
        %vm936 = vcmp.eq.s32.totalorder %v931, 2
        %v937 = vxor.u32 %v920, 2147483648
        %v938 = vsel %vm936, %v937, %v928
        %v939 = vsel %vm932, %v935, %v938
        %v940 = vsel %vm929, nan, %v939
        %v941 = vld [vmem:[%s228] sm:$0xff]
        %v942 = vld [vmem:[%s228 + $0x8] sm:$0xff]
        %v943 = vld [vmem:[%s228 + $0x10] sm:$0xff]
        %v944 = vld [vmem:[%s228 + $0x18] sm:$0xff]
        %v945 = vmul.f32 %v941, %v476
        %v946 = vmul.f32 %v943, %v630
        %v947 = vmul.f32 %v942, %v785
        %v948 = vmul.f32 %v944, %v940
        %v949 = vsub.f32 %v945, %v947
        %v950 = vsub.f32 %v946, %v948
        %951 = vst [vmem:[%s268] sm:$0xff] %v949
        %952 = vst [vmem:[%s268 + $0x10] sm:$0xff] %v950
        %v953 = vmul.f32 %v942, %v476
        %v954 = vmul.f32 %v944, %v630
        %v955 = vmul.f32 %v941, %v785
        %v956 = vmul.f32 %v943, %v940
        %v957 = vadd.f32 %v953, %v955
        %v958 = vadd.f32 %v954, %v956
        %959 = vst [vmem:[%s268 + $0x8] sm:$0xff] %v957
        %960 = vst [vmem:[%s268 + $0x18] sm:$0xff] %v958
        %s961 = sand.u32 %s124, 1
        %s962 = scalar_lea.sflag [#allocation4], %s961
        %s963 = sand.u32 %s124, 1
        %s964 = smul.addr %s963, 32
        %s965 = scalar_lea.vmem [#allocation7], %s964
        // Predicated region
        $region45: #{tpu_custom_call.1} parent=35 // pred_check
          %p966 = pneg %p134
        $region46: #{tpu_custom_call.1} parent=35 // pred_check_branch
          %968 = sbr.rel (%p966) target = $region48
        $region47: #{tpu_custom_call.1} parent=35 // pred_region
          %s969 = smul.u32 2, %s22
          %s970 = ssub.s32 7, %s969
          %p971 = scmp.lt.s32.totalorder %s970, 2
          %s972 = scalar_select %p971, %s970, 2
          %s973 = smul.u32 8, %s972
          %s974 = smul.u32 %s973, 2
          %s975 = ssub.s32 32, %s974
          %s976 = sshll.u32 %s975, 4
          %977 = vsyncadd %s962, %s976
          %p978 = scmp.ne.s32.totalorder 0, %s974
          %s979 = smul.addr %s969, 2
          %s980 = smul.addr %s979, 8
          %s981 = scalar_lea.hbm %s4, %s980
          %s982 = smul.u32 16, %s972
          %s983 = sshll.u32 %s965, 4
          %s984 = int_to_ptr.vmem [resolvable:$true] %s983
          %s985 = sshll.u32 %s981, 4
          %s986 = int_to_ptr.hbm [resolvable:$true] %s985
          %s987 = sshll.u32 %s982, 4
          %991 = dma.vmem_to_hbm [thread:$0]  (%p978), %s984, %s987, %s986, %s962, 256, 256, 16
        $region48: #{tpu_custom_call.1} parent=35 // pred_fallthru
          _
      $region36: #{tpu_custom_call.1} parent=5 // pred_fallthru
        _
      %p992 = scmp.le.s32.totalorder 2, %s17
      // Predicated region
      $region49: #{tpu_custom_call.1} parent=5 // pred_check
        %p993 = pneg %p992
      $region50: #{tpu_custom_call.1} parent=5 // pred_check_branch
        %995 = sbr.rel (%p993) target = $region52
      $region51: #{tpu_custom_call.1} parent=5 // pred_region
        %s996 = ssub.s32 %s17, 2
        // Predicated region
        $region53: #{tpu_custom_call.1} parent=51 // pred_check
          %p997 = pneg %p140
        $region54: #{tpu_custom_call.1} parent=51 // pred_check_branch
          %999 = sbr.rel (%p997) target = $region56
        $region55: #{tpu_custom_call.1} parent=51 // pred_region
          %s1000 = sand.u32 %s125, 1
          %s1001 = scalar_lea.sflag [#allocation4], %s1000
          %s1002 = sand.u32 %s125, 1
          %s1003 = smul.addr %s1002, 32
          %s1004 = scalar_lea.vmem [#allocation7], %s1003
          %1006 = dma.done %s1001, 512
        $region56: #{tpu_custom_call.1} parent=51 // pred_fallthru
          _
      $region52: #{tpu_custom_call.1} parent=5 // pred_fallthru
        _
    $region6: #{tpu_custom_call.1} parent=1 // loop_footer
      %s21 = sadd.s32 1, %s17
    $region7: #{tpu_custom_call.1} parent=1 // loop_footer_branch
      %16 = sbr.rel target = $region3
    $region8: #{tpu_custom_call.1} parent=1 // loop_exit
      _
    %1007 = vsyncpa [#allocation3], 1
    %s1008 = scalar_lea.sflag [#allocation3], 1
    %1009 = vsyncpa %s1008, 1
    %1010 = vsyncpa [#allocation4], 1
    %s1011 = scalar_lea.sflag [#allocation4], 1
    %1012 = vsyncpa %s1011, 1
    %1013 = vsyncpa [#allocation5], 1
    %s1014 = scalar_lea.sflag [#allocation5], 1
    %1015 = vsyncpa %s1014, 1

</llo_original>
